<compile_context>
chip_gen: v6e
topology: v6e:2x2x1
jax: 0.10.0
libtpu: 0.0.40
codegen_flags: <defaults>
</compile_context>

<pallas_src>
import numpy as np
import jax
import jax.numpy as jnp
from jax import lax
from jax.experimental import pallas as pl
from jax.experimental.pallas import tpu as pltpu

SAMPLE_RATE = 44100
MIN_GAIN_DB = -48.0
MAX_GAIN_DB = 24.0
NUM_PARAMS = 19  # forward() indexes p[..., 18], so 19 params are required

_LN10_OVER_20 = float(np.log(10.0) / 20.0)
_LANE = 128
_VMEM_BUDGET = 40 * 1024 * 1024   # conservative: fits v7x's 64 MiB/TC physical VMEM
_VMEM_LIMIT = 48 * 1024 * 1024    # raise past v5e's 16 MiB scoped default

# Per-parameter (min, max) ranges used by restore_from_0to1, in output order:
#  0 gain_dB, 1 pan (identity), 2..12 EQ, 13..17 compressor, 18 reverb time.
_PARAM_MINS = np.array(
    [MIN_GAIN_DB, 0.0,
     -20.0, 20.0, -20.0, 60.0, 0.1, -20.0, 1000.0, 0.1, -20.0, 4000.0, 0.1,
     -60.0, 1.0, 5.0, 5.0, 0.0,
     0.1], dtype=np.float32)
_PARAM_MAXS = np.array(
    [MAX_GAIN_DB, 1.0,
     20.0, 1000.0, 20.0, 1000.0, 6.0, 20.0, 7000.0, 6.0, 20.0,
     float(SAMPLE_RATE // 2 - 1000), 6.0,
     0.0, 20.0, 100.0, 100.0, 12.0,
     10.0], dtype=np.float32)


def _round_up(n: int, m: int) -> int:
    return ((n + m - 1) // m) * m


def _cdiv(a: int, b: int) -> int:
    return (a + b - 1) // b


def _default_target_block_bytes() -> int:
    """Per-grid-step HBM input-byte target, sized per TPU generation."""
    try:
        kind = jax.devices()[0].device_kind.lower()
    except Exception:
        return 4 << 20
    if "v7" in kind:
        return 8 << 20        # ~3.2 TB/s HBM: larger steps to amortize overhead
    if "v5e" in kind or "v5 lite" in kind or "v5litepod" in kind:
        return 2 << 20        # ~0.8 TB/s HBM: smaller steps already amortize
    return 4 << 20            # v6e / default


def _vmem_need_bytes(num_tracks: int, tm: int) -> int:
    """Estimated live VMEM for one (double-buffered) pipeline configuration."""
    t_pad = _round_up(num_tracks, 8)     # sublane padding of the input block
    in_buf = t_pad * tm * 4
    out_buf = 8 * tm * 4                 # (1, tm) row padded to 8 sublanes
    # 2x double-buffer in/out + ~2 row-sized in-kernel temporaries + margin
    return 2 * in_buf + 2 * out_buf + 2 * out_buf + (2 << 20)


def _pick_tile_lanes(seq_len: int, num_tracks: int, bs: int, target_bytes: int) -> int:
    """Lane-tile size: multi-MiB per step, VMEM-budgeted, megacore-friendly."""
    tm = max(_LANE, (target_bytes // (4 * num_tracks)) // _LANE * _LANE)
    tm = min(tm, _round_up(seq_len, _LANE))
    # v7x megacore: with bs == 1 keep >= 2 grid steps on the sample axis.
    if bs == 1 and tm >= seq_len and seq_len > _LANE:
        tm = max(_LANE, _round_up(_cdiv(seq_len, 2), _LANE))
    # Keep the double-buffered working set under the VMEM budget.
    while tm > _LANE and _vmem_need_bytes(num_tracks, tm) > _VMEM_BUDGET:
        tm = max(_LANE, (tm // 2) // _LANE * _LANE)
    return tm


def _make_mix_kernel(half: int, tile_lanes: int):
    """Kernel for one (batch, flat-sample-tile) grid step.

    x_ref: (1, T, tile_lanes)  flat sample tile (left half | right half layout)
    g_ref: (1, T, 2)           per-track (left, right) linear gains
    y_ref: (1, 1, tile_lanes)  mixed flat output tile
    """

    def kernel(x_ref, g_ref, y_ref):
        m0 = pl.program_id(1) * tile_lanes   # first flat sample index of this tile

        @pl.when(m0 + tile_lanes <= half)    # tile entirely in the left channel
        def _():
            y_ref[0] = jnp.sum(x_ref[0] * g_ref[0, :, 0:1], axis=0, keepdims=True)

        @pl.when(m0 >= half)                 # tile entirely in the right channel
        def _():
            y_ref[0] = jnp.sum(x_ref[0] * g_ref[0, :, 1:2], axis=0, keepdims=True)

        straddle = jnp.logical_and(m0 < half, m0 + tile_lanes > half)

        @pl.when(straddle)                   # at most one tile per batch row
        def _():
            x = x_ref[0]
            yl = jnp.sum(x * g_ref[0, :, 0:1], axis=0, keepdims=True)
            yr = jnp.sum(x * g_ref[0, :, 1:2], axis=0, keepdims=True)
            lane = lax.broadcasted_iota(jnp.int32, (1, tile_lanes), 1) + m0
            y_ref[0] = jnp.where(lane < half, yl, yr)

    return kernel


def mixer_forward(x, p, *, tile_lanes: int | None = None,
                  target_block_bytes: int | None = None):
    """x: (bs, num_tracks, seq_len) f32; p: (bs, num_tracks, 19) f32 in (0,1).

    Returns (y, p_out) with y: (bs, 2, seq_len // 2), p_out: (bs, num_tracks, 19).
    """
    x = jnp.asarray(x, jnp.float32)
    p = jnp.asarray(p, jnp.float32)
    bs, num_tracks, seq_len = x.shape
    assert seq_len % 2 == 0, "seq_len must be even (stereo split)"
    assert p.shape == (bs, num_tracks, NUM_PARAMS)
    half = seq_len // 2

    # --- Parameter denormalization + per-track channel gains (tiny; fused XLA). ---
    mins = jnp.asarray(_PARAM_MINS)
    maxs = jnp.asarray(_PARAM_MAXS)
    p_denorm = p * (maxs - mins) + mins                         # (bs, T, 19) -> returned `p`

    gain_lin = jnp.exp(p_denorm[..., 0] * _LN10_OVER_20)        # 10 ** (gain_dB / 20)
    theta = p[..., 1] * (jnp.pi / 2.0)                          # constant-power pan
    gains = jnp.stack([jnp.cos(theta), jnp.sin(theta)], axis=-1) \
        * gain_lin[..., None]                                   # (bs, T, 2) f32

    # --- Lane-dense tiling of the flat sample axis. ---
    if target_block_bytes is None:
        target_block_bytes = _default_target_block_bytes()
    if tile_lanes is None:
        tm = _pick_tile_lanes(seq_len, num_tracks, bs, target_block_bytes)
    else:
        tm = max(_LANE, (int(tile_lanes) // _LANE) * _LANE)
        tm = min(tm, _round_up(seq_len, _LANE))
    n_m = _cdiv(seq_len, tm)

    # TODO(synk): EQ / compressor / reverb audio processing (identity here).
    y_flat = pl.pallas_call(
        _make_mix_kernel(half, tm),
        out_shape=jax.ShapeDtypeStruct((bs, 1, seq_len), jnp.float32),
        grid_spec=pltpu.PrefetchScalarGridSpec(
            num_scalar_prefetch=0,
            grid=(bs, n_m),
            in_specs=[
                # Flat sample tile; ragged last tile handled by Pallas edge masking.
                pl.BlockSpec((1, num_tracks, tm), lambda b, h: (b, 0, h)),
                # Per-track (left, right) gains; same small block every step.
                pl.BlockSpec((1, num_tracks, 2), lambda b, h: (b, 0, 0)),
            ],
            out_specs=pl.BlockSpec((1, 1, tm), lambda b, h: (b, 0, h)),
        ),
        compiler_params=pltpu.CompilerParams(
            dimension_semantics=("parallel", "parallel"),
            vmem_limit_bytes=_VMEM_LIMIT),
    )(x, gains)

    # Flat (left half | right half) row has the same memory layout as (2, half).
    y = y_flat.reshape(bs, 2, half)
    return y, p_denorm


def _mixer_reference(x, p):
    """Pure-JAX reference (EQ/comp/reverb identity, matching the kernel)."""
    x = jnp.asarray(x, jnp.float32)
    p = jnp.asarray(p, jnp.float32)
    bs, num_tracks, seq_len = x.shape
    half = seq_len // 2
    mins = jnp.asarray(_PARAM_MINS)
    maxs = jnp.asarray(_PARAM_MAXS)
    p_denorm = p * (maxs - mins) + mins
    gain_lin = 10.0 ** (p_denorm[..., 0] / 20.0)                  # (bs, T)
    theta = p[..., 1] * jnp.pi / 2.0
    pan = jnp.stack([jnp.cos(theta), jnp.sin(theta)], axis=-1)    # (bs, T, 2)
    x4 = x.reshape(bs, num_tracks, 2, half)
    x4 = x4 * gain_lin[..., None, None] * pan[..., None]
    y = jnp.sum(x4, axis=1)
    return y, p_denorm


def _check(y, p_out, y_ref, p_ref):
    np.testing.assert_allclose(np.asarray(y), np.asarray(y_ref), rtol=1e-5, atol=1e-5)
    np.testing.assert_allclose(np.asarray(p_out), np.asarray(p_ref), rtol=1e-5, atol=1e-4)


if __name__ == "__main__":
    key = jax.random.PRNGKey(0)
    kx, kp = jax.random.split(key)

    bs, num_tracks, seq_len = 2, 4, 2048
    x = jax.random.normal(kx, (bs, num_tracks, seq_len), dtype=jnp.float32)
    p = jax.random.uniform(kp, (bs, num_tracks, NUM_PARAMS), dtype=jnp.float32)
    y_ref, p_ref = _mixer_reference(x, p)

    # Case 1: explicit small tile -> multiple tiles, pure-left / pure-right branches.
    y, p_out = mixer_forward(x, p, tile_lanes=512)
    jax.block_until_ready((y, p_out))
    assert y.shape == (bs, 2, seq_len // 2)
    assert p_out.shape == (bs, num_tracks, NUM_PARAMS)
    _check(y, p_out, y_ref, p_ref)

    # Case 2: default (generation-aware) sizing -> single straddling tile per batch.
    y3, p3_out = mixer_forward(x, p)
    jax.block_until_ready((y3, p3_out))
    _check(y3, p3_out, y_ref, p_ref)

    # Case 3: bs=1, seq_len not a multiple of 256 -> ragged edge tile + channel
    # boundary straddle + the bs==1 megacore tile cap, with NO wrapper pad/slice.
    x2 = jax.random.normal(kx, (1, 3, 360), dtype=jnp.float32)
    p2 = jax.random.uniform(kp, (1, 3, NUM_PARAMS), dtype=jnp.float32)
    y2, p2_out = mixer_forward(x2, p2)
    jax.block_until_ready((y2, p2_out))
    y2_ref, p2_ref = _mixer_reference(x2, p2)
    assert y2.shape == (1, 2, 180)
    _check(y2, p2_out, y2_ref, p2_ref)

    print("KERNEL_OK")
</pallas_src>

<mosaic_0001>
module attributes {stable_mosaic.version = 11 : i64} {
  func.func @kernel(%arg0: i32, %arg1: i32, %arg2: memref<1x4x512xf32, #tpu.memory_space<vmem>>, %arg3: memref<1x4x2xf32, #tpu.memory_space<vmem>>, %arg4: memref<1x1x512xf32, #tpu.memory_space<vmem>>) attributes {dimension_semantics = [#tpu.dimension_semantics<parallel>, #tpu.dimension_semantics<parallel>], iteration_bounds = array<i64: 2, 4>, scalar_prefetch = 0 : i64, scratch_operands = 0 : i64, tpu.core_type = #tpu.core_type<tc>, window_params = [{transform_indices = @transform_0, window_bounds = array<i64: 1, 4, 512>}, {transform_indices = @transform_1, window_bounds = array<i64: 1, 4, 2>}, {transform_indices = @transform_2, window_bounds = array<i64: 1, 1, 512>}]} {
    %c512_i32 = arith.constant 512 : i32
    %0 = arith.muli %arg1, %c512_i32 : i32
    %c512_i32_0 = arith.constant 512 : i32
    %1 = arith.addi %0, %c512_i32_0 : i32
    %c1024_i32 = arith.constant 1024 : i32
    %2 = arith.cmpi sle, %1, %c1024_i32 : i32
    %3 = arith.extui %2 : i1 to i32
    %c0_i32 = arith.constant 0 : i32
    %4 = arith.cmpi ne, %3, %c0_i32 : i32
    scf.if %4 {
      %c0 = arith.constant 0 : index
      %c0_7 = arith.constant 0 : index
      %c0_8 = arith.constant 0 : index
      %14 = vector.load %arg2[%c0, %c0_7, %c0_8] : memref<1x4x512xf32, #tpu.memory_space<vmem>>, vector<1x4x512xf32>
      %15 = vector.shape_cast %14 : vector<1x4x512xf32> to vector<4x512xf32>
      %c0_9 = arith.constant 0 : index
      %c0_10 = arith.constant 0 : index
      %c0_11 = arith.constant 0 : index
      %16 = vector.load %arg3[%c0_9, %c0_10, %c0_11] : memref<1x4x2xf32, #tpu.memory_space<vmem>>, vector<1x4x1xf32>
      %17 = vector.shape_cast %16 : vector<1x4x1xf32> to vector<4x1xf32>
      %18 = vector.broadcast %17 : vector<4x1xf32> to vector<4x512xf32>
      %19 = arith.mulf %15, %18 : vector<4x512xf32>
      %cst = arith.constant dense<0.000000e+00> : vector<512xf32>
      %20 = vector.multi_reduction <add>, %19, %cst [0] : vector<4x512xf32> to vector<512xf32>
      %21 = vector.shape_cast %20 : vector<512xf32> to vector<1x512xf32>
      %c0_12 = arith.constant 0 : index
      %c0_13 = arith.constant 0 : index
      %c0_14 = arith.constant 0 : index
      %22 = vector.load %arg4[%c0_12, %c0_13, %c0_14] : memref<1x1x512xf32, #tpu.memory_space<vmem>>, vector<1x1x512xf32>
      %23 = vector.shape_cast %22 : vector<1x1x512xf32> to vector<1x512xf32>
      %24 = vector.shape_cast %21 : vector<1x512xf32> to vector<1x1x512xf32>
      tpu.vector_store %arg4[%c0_12, %c0_13, %c0_14], %24 {strides = array<i32>} : memref<1x1x512xf32, #tpu.memory_space<vmem>>, vector<1x1x512xf32>,
    } else {
    }
    %c1024_i32_1 = arith.constant 1024 : i32
    %5 = arith.cmpi sge, %0, %c1024_i32_1 : i32
    %6 = arith.extui %5 : i1 to i32
    %c0_i32_2 = arith.constant 0 : i32
    %7 = arith.cmpi ne, %6, %c0_i32_2 : i32
    scf.if %7 {
      %c0 = arith.constant 0 : index
      %c0_7 = arith.constant 0 : index
      %c0_8 = arith.constant 0 : index
      %14 = vector.load %arg2[%c0, %c0_7, %c0_8] : memref<1x4x512xf32, #tpu.memory_space<vmem>>, vector<1x4x512xf32>
      %15 = vector.shape_cast %14 : vector<1x4x512xf32> to vector<4x512xf32>
      %c0_9 = arith.constant 0 : index
      %c0_10 = arith.constant 0 : index
      %c1 = arith.constant 1 : index
      %16 = vector.load %arg3[%c0_9, %c0_10, %c1] : memref<1x4x2xf32, #tpu.memory_space<vmem>>, vector<1x4x1xf32>
      %17 = vector.shape_cast %16 : vector<1x4x1xf32> to vector<4x1xf32>
      %18 = vector.broadcast %17 : vector<4x1xf32> to vector<4x512xf32>
      %19 = arith.mulf %15, %18 : vector<4x512xf32>
      %cst = arith.constant dense<0.000000e+00> : vector<512xf32>
      %20 = vector.multi_reduction <add>, %19, %cst [0] : vector<4x512xf32> to vector<512xf32>
      %21 = vector.shape_cast %20 : vector<512xf32> to vector<1x512xf32>
      %c0_11 = arith.constant 0 : index
      %c0_12 = arith.constant 0 : index
      %c0_13 = arith.constant 0 : index
      %22 = vector.load %arg4[%c0_11, %c0_12, %c0_13] : memref<1x1x512xf32, #tpu.memory_space<vmem>>, vector<1x1x512xf32>
      %23 = vector.shape_cast %22 : vector<1x1x512xf32> to vector<1x512xf32>
      %24 = vector.shape_cast %21 : vector<1x512xf32> to vector<1x1x512xf32>
      tpu.vector_store %arg4[%c0_11, %c0_12, %c0_13], %24 {strides = array<i32>} : memref<1x1x512xf32, #tpu.memory_space<vmem>>, vector<1x1x512xf32>,
    } else {
    }
    %c1024_i32_3 = arith.constant 1024 : i32
    %8 = arith.cmpi slt, %0, %c1024_i32_3 : i32
    %c512_i32_4 = arith.constant 512 : i32
    %9 = arith.addi %0, %c512_i32_4 : i32
    %c1024_i32_5 = arith.constant 1024 : i32
    %10 = arith.cmpi sgt, %9, %c1024_i32_5 : i32
    %11 = arith.andi %8, %10 : i1
    %12 = arith.extui %11 : i1 to i32
    %c0_i32_6 = arith.constant 0 : i32
    %13 = arith.cmpi ne, %12, %c0_i32_6 : i32
    scf.if %13 {
      %c0 = arith.constant 0 : index
      %c0_7 = arith.constant 0 : index
      %c0_8 = arith.constant 0 : index
      %14 = vector.load %arg2[%c0, %c0_7, %c0_8] : memref<1x4x512xf32, #tpu.memory_space<vmem>>, vector<1x4x512xf32>
      %15 = vector.shape_cast %14 : vector<1x4x512xf32> to vector<4x512xf32>
      %c0_9 = arith.constant 0 : index
      %c0_10 = arith.constant 0 : index
      %c0_11 = arith.constant 0 : index
      %16 = vector.load %arg3[%c0_9, %c0_10, %c0_11] : memref<1x4x2xf32, #tpu.memory_space<vmem>>, vector<1x4x1xf32>
      %17 = vector.shape_cast %16 : vector<1x4x1xf32> to vector<4x1xf32>
      %18 = vector.broadcast %17 : vector<4x1xf32> to vector<4x512xf32>
      %19 = arith.mulf %15, %18 : vector<4x512xf32>
      %cst = arith.constant dense<0.000000e+00> : vector<512xf32>
      %20 = vector.multi_reduction <add>, %19, %cst [0] : vector<4x512xf32> to vector<512xf32>
      %21 = vector.shape_cast %20 : vector<512xf32> to vector<1x512xf32>
      %c0_12 = arith.constant 0 : index
      %c0_13 = arith.constant 0 : index
      %c1 = arith.constant 1 : index
      %22 = vector.load %arg3[%c0_12, %c0_13, %c1] : memref<1x4x2xf32, #tpu.memory_space<vmem>>, vector<1x4x1xf32>
      %23 = vector.shape_cast %22 : vector<1x4x1xf32> to vector<4x1xf32>
      %24 = vector.broadcast %23 : vector<4x1xf32> to vector<4x512xf32>
      %25 = arith.mulf %15, %24 : vector<4x512xf32>
      %cst_14 = arith.constant dense<0.000000e+00> : vector<512xf32>
      %26 = vector.multi_reduction <add>, %25, %cst_14 [0] : vector<4x512xf32> to vector<512xf32>
      %27 = vector.shape_cast %26 : vector<512xf32> to vector<1x512xf32>
      %28 = tpu.iota {dimensions = array<i32: 1>} : vector<1x512xi32>
      %29 = vector.broadcast %0 : i32 to vector<1x512xi32>
      %30 = arith.addi %28, %29 : vector<1x512xi32>
      %c1024_i32_15 = arith.constant 1024 : i32
      %31 = vector.broadcast %c1024_i32_15 : i32 to vector<1x512xi32>
      %32 = arith.cmpi slt, %30, %31 : vector<1x512xi32>
      %33 = arith.select %32, %21, %27 : vector<1x512xi1>, vector<1x512xf32>
      %c0_16 = arith.constant 0 : index
      %c0_17 = arith.constant 0 : index
      %c0_18 = arith.constant 0 : index
      %34 = vector.load %arg4[%c0_16, %c0_17, %c0_18] : memref<1x1x512xf32, #tpu.memory_space<vmem>>, vector<1x1x512xf32>
      %35 = vector.shape_cast %34 : vector<1x1x512xf32> to vector<1x512xf32>
      %36 = vector.shape_cast %33 : vector<1x512xf32> to vector<1x1x512xf32>
      tpu.vector_store %arg4[%c0_16, %c0_17, %c0_18], %36 {strides = array<i32>} : memref<1x1x512xf32, #tpu.memory_space<vmem>>, vector<1x1x512xf32>,
    } else {
    }
    return
  }
  func.func @transform_0(%arg0: i32, %arg1: i32) -> (i32, i32, i32) {
    %c0_i32 = arith.constant 0 : i32
    %c0_i32_0 = arith.constant 0 : i32
    return %arg0, %c0_i32, %arg1 : i32, i32, i32
  }
  func.func @transform_1(%arg0: i32, %arg1: i32) -> (i32, i32, i32) {
    %c0_i32 = arith.constant 0 : i32
    %c0_i32_0 = arith.constant 0 : i32
    %c0_i32_1 = arith.constant 0 : i32
    return %arg0, %c0_i32, %c0_i32_0 : i32, i32, i32
  }
  func.func @transform_2(%arg0: i32, %arg1: i32) -> (i32, i32, i32) {
    %c0_i32 = arith.constant 0 : i32
    %c0_i32_0 = arith.constant 0 : i32
    return %arg0, %c0_i32, %arg1 : i32, i32, i32
  }
}

</mosaic_0001>

<llo_original>
// kernel: tpu_custom_call.1
$region0: #{tpu_custom_call.1}
  #allocation0 [shape = 'u32[]', space=smem, size = 0x4, offset = 0x4, fixed_abs, tag = 'smem constant byte address 0x4 - core index']
  #allocation1 [shape = 'u32[144,128]{1,0:T(1,128)}', space=vmem, size = 0x12000, scoped, tag = 'internal scratch']
  %s0 = inlined_call_operand.hbm [shape: f32[2,4,2048], index: 0, kind: input, shape index: {}]
  %s1 = inlined_call_operand.vmem [shape: f32[2,4,2], index: 1, kind: input, shape index: {}]
  %s2 = inlined_call_operand.hbm [shape: f32[2,1,2048], index: 2, kind: output, shape index: {}]
  %s3 = sld [smem:[#allocation0]]
  $region57: #{tpu_custom_call.1} parent=0
    _
  %s5 = ssub.s32 1, %s3
  %s6 = scalar_select 0, %s5, %s3
  $region1: #{tpu_custom_call.1} parent=0
    #allocation2 [shape = 'u8[16384]{0}', space=vmem, size = 0x4000, scoped, tag = 'input window, operand 0']
    #allocation3 [shape = 's32[2]{0}', space=sflag, size = 0x8, scoped, tag = 'scoped memory for tpu_custom_call.1']
    #allocation4 [shape = 's32[2]{0}', space=sflag, size = 0x8, scoped, tag = 'scoped memory for tpu_custom_call.1']
    #allocation5 [shape = 'u8[4096]{0}', space=vmem, size = 0x1000, scoped, tag = 'output window, operand 0']
    %7 = vsyncpa [#allocation3], 0
    %s8 = scalar_lea.sflag [#allocation3], 1
    %9 = vsyncpa %s8, 0
    %10 = vsyncpa [#allocation4], 0
    %s11 = scalar_lea.sflag [#allocation4], 1
    %12 = vsyncpa %s11, 0
    loop: start=0, step=1, limit=10
    $region2: #{tpu_custom_call.1} parent=1 // loop_pre_header
      _
    $region3: #{tpu_custom_call.1} parent=1 // loop_header
      %s14 = sphi 0, %s18
      %p15 = scmp.ge.s32.totalorder %s14, 10
      %s21 = sphi 0, %s33
      %s22 = sphi 0, %s29
      %s23 = sphi 0, %s21
      %s24 = sphi 0, %s22
      %s25 = sphi 0, %s23
      %s26 = sphi 0, %s24
      %s38 = sphi 0, %s40
      %s41 = sphi 0, %s38
      %s42 = sphi 0, %s41
      %s58 = sphi 0, %s42
      %s64 = sphi 0, %s66
      %s67 = sphi 0, %s64
      %s68 = sphi 0, %s67
      %s84 = sphi 0, %s68
      %s92 = sphi 0, %s94
      %s95 = sphi 0, %s92
      %s96 = sphi 0, %s95
      %s112 = sphi 0, %s96
    $region4: #{tpu_custom_call.1} parent=1 // loop_header_branch
      %17 = sbr.rel (%p15) target = $region8
    $region5: #{tpu_custom_call.1} parent=1 // loop_body
      %s19 = ssub.s32 %s14, 1
      %s20 = ssub.s32 %s14, 2
      %s27 = sadd.s32 1, %s22
      %p28 = scmp.ge.s32.totalorder %s27, 4
      %s29 = scalar_select %p28, 0, %s27
      %s30 = sadd.s32 1, %s21
      %s31 = scalar_select %p28, %s30, %s21
      %p32 = scmp.ge.s32.totalorder %s31, 2
      %s33 = scalar_select %p32, 0, %s31
      %s34 = ssub.s32 %s21, %s33
      %s35 = ssub.s32 %s22, %s29
      %s36 = sor.u32 %s34, %s35
      %p37 = scmp.eq.s32.totalorder %s36, 0
      %s39 = sadd.s32 %s38, 1
      %s40 = scalar_select %p37, %s38, %s39
      %p43 = pneg %p37
      %p44 = scmp.eq.s32.totalorder %s14, 7
      %p45 = por %p43, %p44
      %p46 = scmp.ne.s32.totalorder %s38, %s41
      %p47 = scmp.eq.s32.totalorder %s14, 0
      %p48 = por %p46, %p47
      %p49 = scmp.ne.s32.totalorder %s38, %s41
      %p50 = scmp.eq.s32.totalorder %s19, 7
      %p51 = por %p49, %p50
      %p52 = scmp.ne.s32.totalorder %s41, %s42
      %p53 = scmp.eq.s32.totalorder %s19, 0
      %p54 = por %p52, %p53
      %p55 = scmp.ne.s32.totalorder %s41, %s42
      %p56 = scmp.eq.s32.totalorder %s20, 7
      %p57 = por %p55, %p56
      %p59 = scmp.ne.s32.totalorder %s42, %s58
      %p60 = scmp.eq.s32.totalorder %s20, 0
      %p61 = por %p59, %p60
      %s62 = ssub.s32 %s21, %s33
      %p63 = scmp.eq.s32.totalorder %s62, 0
      %s65 = sadd.s32 %s64, 1
      %s66 = scalar_select %p63, %s64, %s65
      %p69 = pneg %p63
      %p70 = scmp.eq.s32.totalorder %s14, 7
      %p71 = por %p69, %p70
      %p72 = scmp.ne.s32.totalorder %s64, %s67
      %p73 = scmp.eq.s32.totalorder %s14, 0
      %p74 = por %p72, %p73
      %p75 = scmp.ne.s32.totalorder %s64, %s67
      %p76 = scmp.eq.s32.totalorder %s19, 7
      %p77 = por %p75, %p76
      %p78 = scmp.ne.s32.totalorder %s67, %s68
      %p79 = scmp.eq.s32.totalorder %s19, 0
      %p80 = por %p78, %p79
      %p81 = scmp.ne.s32.totalorder %s67, %s68
      %p82 = scmp.eq.s32.totalorder %s20, 7
      %p83 = por %p81, %p82
      %p85 = scmp.ne.s32.totalorder %s68, %s84
      %p86 = scmp.eq.s32.totalorder %s20, 0
      %p87 = por %p85, %p86
      %s88 = ssub.s32 %s21, %s33
      %s89 = ssub.s32 %s22, %s29
      %s90 = sor.u32 %s88, %s89
      %p91 = scmp.eq.s32.totalorder %s90, 0
      %s93 = sadd.s32 %s92, 1
      %s94 = scalar_select %p91, %s92, %s93
      %p97 = pneg %p91
      %p98 = scmp.eq.s32.totalorder %s14, 7
      %p99 = por %p97, %p98
      %p100 = scmp.ne.s32.totalorder %s92, %s95
      %p101 = scmp.eq.s32.totalorder %s14, 0
      %p102 = por %p100, %p101
      %p103 = scmp.ne.s32.totalorder %s92, %s95
      %p104 = scmp.eq.s32.totalorder %s19, 7
      %p105 = por %p103, %p104
      %p106 = scmp.ne.s32.totalorder %s95, %s96
      %p107 = scmp.eq.s32.totalorder %s19, 0
      %p108 = por %p106, %p107
      %p109 = scmp.ne.s32.totalorder %s95, %s96
      %p110 = scmp.eq.s32.totalorder %s20, 7
      %p111 = por %p109, %p110
      %p113 = scmp.ne.s32.totalorder %s96, %s112
      %p114 = scmp.eq.s32.totalorder %s20, 0
      %p115 = por %p113, %p114
      %p116 = scmp.le.s32.totalorder 1, %s14
      %p117 = scmp.lt.s32.totalorder %s14, 9
      %p118 = pnand %p116, %p117
      %p119 = pneg %p118
      // Predicated region
      $region9: #{tpu_custom_call.1} parent=5 // pred_check
        _
      $region10: #{tpu_custom_call.1} parent=5 // pred_check_branch
        %121 = sbr.rel (%p118) target = $region12
      $region11: #{tpu_custom_call.1} parent=5 // pred_region
        %s122 = ssub.s32 %s14, 1
      $region12: #{tpu_custom_call.1} parent=5 // pred_fallthru
        _
      %p123 = scmp.lt.s32.totalorder %s14, 8
      // Predicated region
      $region13: #{tpu_custom_call.1} parent=5 // pred_check
        %p124 = pneg %p123
      $region14: #{tpu_custom_call.1} parent=5 // pred_check_branch
        %126 = sbr.rel (%p124) target = $region16
      $region15: #{tpu_custom_call.1} parent=5 // pred_region
        // Predicated region
        $region17: #{tpu_custom_call.1} parent=15 // pred_check
          %p127 = pneg %p48
        $region18: #{tpu_custom_call.1} parent=15 // pred_check_branch
          %129 = sbr.rel (%p127) target = $region20
        $region19: #{tpu_custom_call.1} parent=15 // pred_region
          %s130 = sand.u32 %s38, 1
          %s131 = scalar_lea.sflag [#allocation3], %s130
          %s132 = sand.u32 %s38, 1
          %s133 = smul.addr %s132, 16
          %s134 = scalar_lea.vmem [#allocation2], %s133
          %s135 = smul.u32 4, %s22
          %s137 = ssub.s32 256, 256
          %138 = vsyncadd %s131, %s137
          %s139 = smul.addr %s21, 16
          %s140 = sadd.s32 %s135, %s139
          %s141 = smul.addr %s140, 64
          %s142 = scalar_lea.hbm %s0, %s141
          %s144 = sshll.u32 %s134, 4
          %s145 = int_to_ptr.vmem [resolvable:$true] %s144
          %147 = dma.hbm_to_vmem [thread:$0]  %s142, 256, %s145, %s131
        $region20: #{tpu_custom_call.1} parent=15 // pred_fallthru
          _
        // Predicated region
        $region21: #{tpu_custom_call.1} parent=15 // pred_check
          %p148 = pneg %p74
        $region22: #{tpu_custom_call.1} parent=15 // pred_check_branch
          %150 = sbr.rel (%p148) target = $region24
        $region23: #{tpu_custom_call.1} parent=15 // pred_region
          %p151 = scmp.lt.s32.totalorder %s21, 1
          %s152 = scalar_select %p151, %s21, 1
          %s153 = smul.addr %s152, 4
          %s154 = scalar_lea.vmem %s1, %s153
        $region24: #{tpu_custom_call.1} parent=15 // pred_fallthru
          _
      $region16: #{tpu_custom_call.1} parent=5 // pred_fallthru
        _
      %p155 = scmp.le.s32.totalorder 1, %s14
      %p156 = scmp.lt.s32.totalorder %s14, 9
      %p157 = pnand %p155, %p156
      %p158 = pneg %p157
      // Predicated region
      $region25: #{tpu_custom_call.1} parent=5 // pred_check
        _
      $region26: #{tpu_custom_call.1} parent=5 // pred_check_branch
        %160 = sbr.rel (%p157) target = $region28
      $region27: #{tpu_custom_call.1} parent=5 // pred_region
        %s161 = ssub.s32 %s14, 1
        %s162 = sand.u32 %s41, 1
        %s163 = scalar_lea.sflag [#allocation3], %s162
        %s164 = sand.u32 %s41, 1
        %s165 = smul.addr %s164, 16
        %s166 = scalar_lea.vmem [#allocation2], %s165
        // Predicated region
        $region29: #{tpu_custom_call.1} parent=27 // pred_check
          %p167 = pneg %p54
        $region30: #{tpu_custom_call.1} parent=27 // pred_check_branch
          %169 = sbr.rel (%p167) target = $region32
        $region31: #{tpu_custom_call.1} parent=27 // pred_region
          %170 = dma.done %s163, 256
        $region32: #{tpu_custom_call.1} parent=27 // pred_fallthru
          _
        %s171 = sand.u32 %s41, 1
        %s172 = scalar_lea.sflag [#allocation3], %s171
        %s173 = sand.u32 %s41, 1
        %s174 = smul.addr %s173, 16
        %s175 = scalar_lea.vmem [#allocation2], %s174
        %p176 = pneg %p54
        %p177 = pneg %p51
        %p178 = scmp.lt.s32.totalorder %s23, 1
        %s179 = scalar_select %p178, %s23, 1
        %s180 = smul.addr %s179, 4
        %s181 = scalar_lea.vmem %s1, %s180
        %p182 = pneg %p80
        %p183 = pneg %p77
        %p184 = pneg %p108
        %p185 = pneg %p105
        %s186 = sand.u32 %s95, 1
        %s187 = scalar_lea.sflag [#allocation4], %s186
        %s188 = sand.u32 %s95, 1
        %s189 = smul.addr %s188, 4
        %s190 = scalar_lea.vmem [#allocation5], %s189
        %s191 = smul.u32 4, %s24
        %p192 = scmp.lt.s32.totalorder %s23, 1
        %s193 = scalar_select %p192, %s23, 1
        %s194 = smul.addr %s193, 4
        %s195 = scalar_lea.vmem %s1, %s194
        %s196 = smul.u32 4, %s24
        %s197 = smul.u32 %s24, 512
        %s198 = sadd.s32 %s197, 512
        %p199 = scmp.le.s32.totalorder %s198, 1024
        // Predicated region
        $region33: #{tpu_custom_call.1} parent=27 // pred_check
          %p200 = pneg %p199
        $region34: #{tpu_custom_call.1} parent=27 // pred_check_branch
          %202 = sbr.rel (%p200) target = $region36
        $region35: #{tpu_custom_call.1} parent=27 // pred_region
          %v203 = vld [vmem:[%s166] sm:$0xff]
          %v204 = vld [vmem:[%s166 + $0x8] sm:$0xff]
          %v205 = vld [vmem:[%s195] sm:$0xf]
          %207 = vset.pattern.permute.xlu0 0
          %208 = vperm.xlu0 %207, %v205
          %v209 = vpop.permute.xlu0 %208
          %v211 = vunpack.c.l.s4 839922192
          %v212 = vunpack.c.0.s8 %v211
          %v213 = vlaneseq
          %v214 = vshrl.u32 %v213, 7
          %v215 = vsub.s32 %v212, %v214
          %v216 = vrot.slane %v209, %v215
          %v218 = vmul.f32 %v203, %v216
          %v219 = vmul.f32 %v204, %v216
          %v222 = vcombine.high %v218, %v218
          %v223 = vcombine.high %v219, %v219
          %vm226 = vcmask 1043456
          %v227 = vsel %vm226, %v218, 0.0
          %v228 = vrot.slane %v227, 4
          %v229 = vadd.f32 %v227, %v228
          %v230 = vrot.slane %v229, 2
          %v231 = vadd.f32 %v229, %v230
          %v232 = vrot.slane %v231, 1
          %v233 = vadd.f32 %v231, %v232
          %v234 = vsel %vm226, %v222, 0.0
          %v235 = vrot.slane %v234, 4
          %v236 = vadd.f32 %v234, %v235
          %v237 = vrot.slane %v236, 2
          %v238 = vadd.f32 %v236, %v237
          %v239 = vrot.slane %v238, 1
          %v240 = vadd.f32 %v238, %v239
          %v241 = vsel %vm226, %v219, 0.0
          %v242 = vrot.slane %v241, 4
          %v243 = vadd.f32 %v241, %v242
          %v244 = vrot.slane %v243, 2
          %v245 = vadd.f32 %v243, %v244
          %v246 = vrot.slane %v245, 1
          %v247 = vadd.f32 %v245, %v246
          %v248 = vsel %vm226, %v223, 0.0
          %v249 = vrot.slane %v248, 4
          %v250 = vadd.f32 %v248, %v249
          %v251 = vrot.slane %v250, 2
          %v252 = vadd.f32 %v250, %v251
          %v253 = vrot.slane %v252, 1
          %v254 = vadd.f32 %v252, %v253
          %v259 = vcombine.low %v233, %v240
          %v260 = vcombine.low %v247, %v254
          %v262 = vunpack.c.l.s4 1966171168
          %v263 = vunpack.c.0.s8 %v262
          %v264 = vlaneseq
          %v265 = vshrl.u32 %v264, 7
          %v266 = vsub.s32 %v263, %v265
          %v267 = vrot.slane %v259, %v266
          %v269 = vunpack.c.l.s4 1966171168
          %v270 = vunpack.c.0.s8 %v269
          %v271 = vlaneseq
          %v272 = vshrl.u32 %v271, 7
          %v273 = vsub.s32 %v270, %v272
          %v274 = vrot.slane %v260, %v273
          %v275 = vcombine.low %v267, %v274
          %v277 = vunpack.c.l.s4 1966171168
          %v278 = vunpack.c.0.s8 %v277
          %v279 = vlaneseq
          %v280 = vshrl.u32 %v279, 7
          %v281 = vsub.s32 %v278, %v280
          %v282 = vrot.slane %v275, %v281
          %v284 = vlaneseq
          %vm285 = vcmp.ge.s32.totalorder %v284, 0
          %vm286 = vcmp.lt.s32.totalorder %v284, 512
          %vm287 = vmand %vm285, %vm286
          %288 = vst.msk [vmem:[%s190] sm:$0xf] %vm287, %v282
        $region36: #{tpu_custom_call.1} parent=27 // pred_fallthru
          _
        %p289 = scmp.ge.s32.totalorder %s197, 1024
        // Predicated region
        $region37: #{tpu_custom_call.1} parent=27 // pred_check
          %p290 = pneg %p289
        $region38: #{tpu_custom_call.1} parent=27 // pred_check_branch
          %292 = sbr.rel (%p290) target = $region40
        $region39: #{tpu_custom_call.1} parent=27 // pred_region
          %v293 = vld [vmem:[%s166] sm:$0xff]
          %v294 = vld [vmem:[%s166 + $0x8] sm:$0xff]
          %v295 = vld [vmem:[%s195] sm:$0xf]
          %297 = vset.pattern.permute.xlu0 1
          %298 = vperm.xlu0 %297, %v295
          %v299 = vpop.permute.xlu0 %298
          %v301 = vunpack.c.l.s4 839922192
          %v302 = vunpack.c.0.s8 %v301
          %v303 = vlaneseq
          %v304 = vshrl.u32 %v303, 7
          %v305 = vsub.s32 %v302, %v304
          %v306 = vrot.slane %v299, %v305
          %v308 = vmul.f32 %v293, %v306
          %v309 = vmul.f32 %v294, %v306
          %v312 = vcombine.high %v308, %v308
          %v313 = vcombine.high %v309, %v309
          %vm316 = vcmask 1043456
          %v317 = vsel %vm316, %v308, 0.0
          %v318 = vrot.slane %v317, 4
          %v319 = vadd.f32 %v317, %v318
          %v320 = vrot.slane %v319, 2
          %v321 = vadd.f32 %v319, %v320
          %v322 = vrot.slane %v321, 1
          %v323 = vadd.f32 %v321, %v322
          %v324 = vsel %vm316, %v312, 0.0
          %v325 = vrot.slane %v324, 4
          %v326 = vadd.f32 %v324, %v325
          %v327 = vrot.slane %v326, 2
          %v328 = vadd.f32 %v326, %v327
          %v329 = vrot.slane %v328, 1
          %v330 = vadd.f32 %v328, %v329
          %v331 = vsel %vm316, %v309, 0.0
          %v332 = vrot.slane %v331, 4
          %v333 = vadd.f32 %v331, %v332
          %v334 = vrot.slane %v333, 2
          %v335 = vadd.f32 %v333, %v334
          %v336 = vrot.slane %v335, 1
          %v337 = vadd.f32 %v335, %v336
          %v338 = vsel %vm316, %v313, 0.0
          %v339 = vrot.slane %v338, 4
          %v340 = vadd.f32 %v338, %v339
          %v341 = vrot.slane %v340, 2
          %v342 = vadd.f32 %v340, %v341
          %v343 = vrot.slane %v342, 1
          %v344 = vadd.f32 %v342, %v343
          %v349 = vcombine.low %v323, %v330
          %v350 = vcombine.low %v337, %v344
          %v352 = vunpack.c.l.s4 1966171168
          %v353 = vunpack.c.0.s8 %v352
          %v354 = vlaneseq
          %v355 = vshrl.u32 %v354, 7
          %v356 = vsub.s32 %v353, %v355
          %v357 = vrot.slane %v349, %v356
          %v359 = vunpack.c.l.s4 1966171168
          %v360 = vunpack.c.0.s8 %v359
          %v361 = vlaneseq
          %v362 = vshrl.u32 %v361, 7
          %v363 = vsub.s32 %v360, %v362
          %v364 = vrot.slane %v350, %v363
          %v365 = vcombine.low %v357, %v364
          %v367 = vunpack.c.l.s4 1966171168
          %v368 = vunpack.c.0.s8 %v367
          %v369 = vlaneseq
          %v370 = vshrl.u32 %v369, 7
          %v371 = vsub.s32 %v368, %v370
          %v372 = vrot.slane %v365, %v371
          %v374 = vlaneseq
          %vm375 = vcmp.ge.s32.totalorder %v374, 0
          %vm376 = vcmp.lt.s32.totalorder %v374, 512
          %vm377 = vmand %vm375, %vm376
          %378 = vst.msk [vmem:[%s190] sm:$0xf] %vm377, %v372
        $region40: #{tpu_custom_call.1} parent=27 // pred_fallthru
          _
        %p379 = scmp.lt.s32.totalorder %s197, 1024
        %p380 = scmp.gt.s32.totalorder %s198, 1024
        %p381 = pnand %p379, %p380
        %p382 = pneg %p381
        // Predicated region
        $region41: #{tpu_custom_call.1} parent=27 // pred_check
          _
        $region42: #{tpu_custom_call.1} parent=27 // pred_check_branch
          %384 = sbr.rel (%p381) target = $region44
        $region43: #{tpu_custom_call.1} parent=27 // pred_region
          %v385 = vld [vmem:[%s166] sm:$0xff]
          %v386 = vld [vmem:[%s166 + $0x8] sm:$0xff]
          %v387 = vld [vmem:[%s195] sm:$0xf]
          %389 = vset.pattern.permute.xlu0 0
          %390 = vperm.xlu0 %389, %v387
          %v391 = vpop.permute.xlu0 %390
          %v393 = vunpack.c.l.s4 839922192
          %v394 = vunpack.c.0.s8 %v393
          %v395 = vlaneseq
          %v396 = vshrl.u32 %v395, 7
          %v397 = vsub.s32 %v394, %v396
          %v398 = vrot.slane %v391, %v397
          %v400 = vmul.f32 %v385, %v398
          %v401 = vmul.f32 %v386, %v398
          %v404 = vcombine.high %v400, %v400
          %v405 = vcombine.high %v401, %v401
          %vm408 = vcmask 1043456
          %v409 = vsel %vm408, %v400, 0.0
          %v410 = vrot.slane %v409, 4
          %v411 = vadd.f32 %v409, %v410
          %v412 = vrot.slane %v411, 2
          %v413 = vadd.f32 %v411, %v412
          %v414 = vrot.slane %v413, 1
          %v415 = vadd.f32 %v413, %v414
          %v416 = vsel %vm408, %v404, 0.0
          %v417 = vrot.slane %v416, 4
          %v418 = vadd.f32 %v416, %v417
          %v419 = vrot.slane %v418, 2
          %v420 = vadd.f32 %v418, %v419
          %v421 = vrot.slane %v420, 1
          %v422 = vadd.f32 %v420, %v421
          %v423 = vsel %vm408, %v401, 0.0
          %v424 = vrot.slane %v423, 4
          %v425 = vadd.f32 %v423, %v424
          %v426 = vrot.slane %v425, 2
          %v427 = vadd.f32 %v425, %v426
          %v428 = vrot.slane %v427, 1
          %v429 = vadd.f32 %v427, %v428
          %v430 = vsel %vm408, %v405, 0.0
          %v431 = vrot.slane %v430, 4
          %v432 = vadd.f32 %v430, %v431
          %v433 = vrot.slane %v432, 2
          %v434 = vadd.f32 %v432, %v433
          %v435 = vrot.slane %v434, 1
          %v436 = vadd.f32 %v434, %v435
          %v437 = vld [vmem:[%s195] sm:$0xf]
          %439 = vset.pattern.permute.xlu0 1
          %440 = vperm.xlu0 %439, %v437
          %v441 = vpop.permute.xlu0 %440
          %v443 = vunpack.c.l.s4 839922192
          %v444 = vunpack.c.0.s8 %v443
          %v445 = vlaneseq
          %v446 = vshrl.u32 %v445, 7
          %v447 = vsub.s32 %v444, %v446
          %v448 = vrot.slane %v441, %v447
          %v450 = vmul.f32 %v385, %v448
          %v451 = vmul.f32 %v386, %v448
          %v454 = vcombine.high %v450, %v450
          %v455 = vcombine.high %v451, %v451
          %v458 = vsel %vm408, %v450, 0.0
          %v459 = vrot.slane %v458, 4
          %v460 = vadd.f32 %v458, %v459
          %v461 = vrot.slane %v460, 2
          %v462 = vadd.f32 %v460, %v461
          %v463 = vrot.slane %v462, 1
          %v464 = vadd.f32 %v462, %v463
          %v465 = vsel %vm408, %v454, 0.0
          %v466 = vrot.slane %v465, 4
          %v467 = vadd.f32 %v465, %v466
          %v468 = vrot.slane %v467, 2
          %v469 = vadd.f32 %v467, %v468
          %v470 = vrot.slane %v469, 1
          %v471 = vadd.f32 %v469, %v470
          %v472 = vsel %vm408, %v451, 0.0
          %v473 = vrot.slane %v472, 4
          %v474 = vadd.f32 %v472, %v473
          %v475 = vrot.slane %v474, 2
          %v476 = vadd.f32 %v474, %v475
          %v477 = vrot.slane %v476, 1
          %v478 = vadd.f32 %v476, %v477
          %v479 = vsel %vm408, %v455, 0.0
          %v480 = vrot.slane %v479, 4
          %v481 = vadd.f32 %v479, %v480
          %v482 = vrot.slane %v481, 2
          %v483 = vadd.f32 %v481, %v482
          %v484 = vrot.slane %v483, 1
          %v485 = vadd.f32 %v483, %v484
          %v486 = vlaneseq
          %v487 = vand.u32 %v486, 127
          %v488 = vadd.s32 %v487, 128
          %v489 = vadd.s32 %v487, 256
          %v490 = vadd.s32 %v487, 384
          %v491 = vstv %s197
          %v492 = vadd.s32 %v487, %v491
          %v493 = vadd.s32 %v488, %v491
          %v494 = vadd.s32 %v489, %v491
          %v495 = vadd.s32 %v490, %v491
          %vm496 = vcmp.lt.s32.totalorder %v492, 1024
          %vm497 = vcmp.lt.s32.totalorder %v493, 1024
          %vm498 = vcmp.lt.s32.totalorder %v494, 1024
          %vm499 = vcmp.lt.s32.totalorder %v495, 1024
          %v500 = vsel %vm496, %v415, %v464
          %v501 = vsel %vm497, %v422, %v471
          %v502 = vsel %vm498, %v429, %v478
          %v503 = vsel %vm499, %v436, %v485
          %v508 = vcombine.low %v500, %v501
          %v509 = vcombine.low %v502, %v503
          %v511 = vunpack.c.l.s4 1966171168
          %v512 = vunpack.c.0.s8 %v511
          %v513 = vlaneseq
          %v514 = vshrl.u32 %v513, 7
          %v515 = vsub.s32 %v512, %v514
          %v516 = vrot.slane %v508, %v515
          %v518 = vunpack.c.l.s4 1966171168
          %v519 = vunpack.c.0.s8 %v518
          %v520 = vlaneseq
          %v521 = vshrl.u32 %v520, 7
          %v522 = vsub.s32 %v519, %v521
          %v523 = vrot.slane %v509, %v522
          %v524 = vcombine.low %v516, %v523
          %v526 = vunpack.c.l.s4 1966171168
          %v527 = vunpack.c.0.s8 %v526
          %v528 = vlaneseq
          %v529 = vshrl.u32 %v528, 7
          %v530 = vsub.s32 %v527, %v529
          %v531 = vrot.slane %v524, %v530
          %v533 = vlaneseq
          %vm534 = vcmp.ge.s32.totalorder %v533, 0
          %vm535 = vcmp.lt.s32.totalorder %v533, 512
          %vm536 = vmand %vm534, %vm535
          %537 = vst.msk [vmem:[%s190] sm:$0xf] %vm536, %v531
        $region44: #{tpu_custom_call.1} parent=27 // pred_fallthru
          _
        %s538 = sand.u32 %s95, 1
        %s539 = scalar_lea.sflag [#allocation4], %s538
        %s540 = sand.u32 %s95, 1
        %s541 = smul.addr %s540, 4
        %s542 = scalar_lea.vmem [#allocation5], %s541
        // Predicated region
        $region45: #{tpu_custom_call.1} parent=27 // pred_check
          %p543 = pneg %p105
        $region46: #{tpu_custom_call.1} parent=27 // pred_check_branch
          %545 = sbr.rel (%p543) target = $region48
        $region47: #{tpu_custom_call.1} parent=27 // pred_region
          %s546 = smul.u32 4, %s24
          %s548 = ssub.s32 64, 64
          %549 = vsyncadd %s539, %s548
          %s550 = smul.addr %s23, 16
          %s551 = sadd.s32 %s546, %s550
          %s552 = smul.addr %s551, 16
          %s553 = scalar_lea.hbm %s2, %s552
          %s555 = sshll.u32 %s542, 4
          %s556 = int_to_ptr.vmem [resolvable:$true] %s555
          %558 = dma.vmem_to_hbm [thread:$0]  %s556, 64, %s553, %s539
        $region48: #{tpu_custom_call.1} parent=27 // pred_fallthru
          _
      $region28: #{tpu_custom_call.1} parent=5 // pred_fallthru
        _
      %p559 = scmp.le.s32.totalorder 2, %s14
      // Predicated region
      $region49: #{tpu_custom_call.1} parent=5 // pred_check
        %p560 = pneg %p559
      $region50: #{tpu_custom_call.1} parent=5 // pred_check_branch
        %562 = sbr.rel (%p560) target = $region52
      $region51: #{tpu_custom_call.1} parent=5 // pred_region
        %s563 = ssub.s32 %s14, 2
        // Predicated region
        $region53: #{tpu_custom_call.1} parent=51 // pred_check
          %p564 = pneg %p111
        $region54: #{tpu_custom_call.1} parent=51 // pred_check_branch
          %566 = sbr.rel (%p564) target = $region56
        $region55: #{tpu_custom_call.1} parent=51 // pred_region
          %s567 = sand.u32 %s96, 1
          %s568 = scalar_lea.sflag [#allocation4], %s567
          %s569 = sand.u32 %s96, 1
          %s570 = smul.addr %s569, 4
          %s571 = scalar_lea.vmem [#allocation5], %s570
          %572 = dma.done %s568, 64
        $region56: #{tpu_custom_call.1} parent=51 // pred_fallthru
          _
      $region52: #{tpu_custom_call.1} parent=5 // pred_fallthru
        _
    $region6: #{tpu_custom_call.1} parent=1 // loop_footer
      %s18 = sadd.s32 1, %s14
    $region7: #{tpu_custom_call.1} parent=1 // loop_footer_branch
      %13 = sbr.rel target = $region3
    $region8: #{tpu_custom_call.1} parent=1 // loop_exit
      _
    %573 = vsyncpa [#allocation3], 1
    %s574 = scalar_lea.sflag [#allocation3], 1
    %575 = vsyncpa %s574, 1
    %576 = vsyncpa [#allocation4], 1
    %s577 = scalar_lea.sflag [#allocation4], 1
    %578 = vsyncpa %s577, 1

</llo_original>
